<compile_context>
chip_gen: v7x
topology: tpu7x:2x2x1
jax: 0.10.0
libtpu: 0.0.40
codegen_flags: <defaults>
</compile_context>

<pallas_src>
import functools

import jax
import jax.numpy as jnp
from jax.experimental import pallas as pl
from jax.experimental.pallas import tpu as pltpu


def _round_up(x, m):
    return (x + m - 1) // m * m


# --------------------------------------------------------------------------- #
# Kernel 1: LoRA down-projection  low = x @ A   ([Mp, Kp] @ [Kp, r_pad])
# --------------------------------------------------------------------------- #
def _lora_down_kernel(x_ref, a_ref, low_ref, acc_ref):
    k = pl.program_id(1)

    @pl.when(k == 0)
    def _():
        acc_ref[...] = jnp.zeros_like(acc_ref)

    acc_ref[...] += jnp.dot(x_ref[...], a_ref[...],
                            preferred_element_type=jnp.float32)

    @pl.when(k == pl.num_programs(1) - 1)
    def _():
        low_ref[...] = acc_ref[...].astype(low_ref.dtype)


# --------------------------------------------------------------------------- #
# Kernel 2: base GEMM + LoRA up-projection epilogue
#   out = x @ W^T + bias + (low @ B) * scaling
# --------------------------------------------------------------------------- #
def _lora_linear_kernel(x_ref, wt_ref, b_ref, low_ref, bl_ref, o_ref,
                        acc_ref, *, scaling):
    k = pl.program_id(2)

    @pl.when(k == 0)
    def _():
        acc_ref[...] = jnp.zeros_like(acc_ref)

    # Frozen base projection tile: acc += x_tile @ (W^T)_tile (f32 MXU accumulate).
    acc_ref[...] += jnp.dot(x_ref[...], wt_ref[...],
                            preferred_element_type=jnp.float32)

    @pl.when(k == pl.num_programs(2) - 1)
    def _():
        # LoRA up-projection; scaling applied to the f32 result (matches the
        # PyTorch order: (x @ A @ B) * scaling; no extra pre-matmul rounding).
        lora = jnp.dot(low_ref[...], bl_ref[...],
                       preferred_element_type=jnp.float32)       # [tm, tn] f32
        o_ref[...] = (acc_ref[...] + b_ref[...] + lora * scaling).astype(o_ref.dtype)


# --------------------------------------------------------------------------- #
# One-time (model-load) preprocessing of the frozen weights.
# --------------------------------------------------------------------------- #
def prepare_lora_params(weight, bias, lora_right, lora_left, lora_scaling,
                        *, tn=512, tk=512):
    """weight:      [N, K] frozen base weight (PyTorch out_features x in_features)
       bias:        [N] or None
       lora_right:  [K, r]   (A)
       lora_left:   [r, N]   (B)
       lora_scaling: already divided by lora_dim (== module's self.lora_scaling)."""
    N, K = weight.shape
    r = lora_right.shape[1]

    # Clamp tiles for small problems; keep them (8, 128)-aligned.
    tn = min(tn, _round_up(N, 128))
    tk = min(tk, _round_up(K, 128))
    r_pad = _round_up(r, 128)

    Kp = _round_up(K, tk)
    Np = _round_up(N, tn)

    wt = jnp.pad(weight.T, ((0, Kp - K), (0, Np - N)))                 # [Kp, Np]
    if bias is None:
        bias = jnp.zeros((N,), weight.dtype)
    b2d = jnp.pad(bias.reshape(1, N), ((0, 0), (0, Np - N)))           # [1, Np]
    a_pad = jnp.pad(lora_right, ((0, Kp - K), (0, r_pad - r)))         # [Kp, r_pad]
    bl_pad = jnp.pad(lora_left, ((0, r_pad - r), (0, Np - N)))         # [r_pad, Np]

    return dict(wt=wt, bias=b2d, a=a_pad, b=bl_pad,
                scaling=float(lora_scaling),
                dims=(K, N), tiles=(tn, tk, r_pad))


# --------------------------------------------------------------------------- #
# Forward:  x: [..., in_features] -> [..., out_features]
# --------------------------------------------------------------------------- #
def lora_linear(x, params, *, tm=512):
    K, N = params["dims"]
    tn, tk, r_pad = params["tiles"]
    wt, b2d, a_pad, bl_pad = params["wt"], params["bias"], params["a"], params["b"]
    Kp, Np = wt.shape
    scaling = params["scaling"]

    lead = x.shape[:-1]
    x2 = x.reshape(-1, K)
    M = x2.shape[0]

    tm = min(tm, _round_up(M, 16))
    Mp = _round_up(M, tm)
    if Mp != M or Kp != K:
        x2 = jnp.pad(x2, ((0, Mp - M), (0, Kp - K)))

    itemsize = jnp.dtype(x.dtype).itemsize
    gm, gn, gk = Mp // tm, Np // tn, Kp // tk

    # ---------------- Pass 1: low = x @ A  (tiny: [Mp, r_pad]) --------------- #
    low = pl.pallas_call(
        _lora_down_kernel,
        out_shape=jax.ShapeDtypeStruct((Mp, r_pad), x.dtype),
        grid_spec=pltpu.PrefetchScalarGridSpec(
            num_scalar_prefetch=0,
            grid=(gm, gk),
            in_specs=[
                pl.BlockSpec((tm, tk), lambda i, k: (i, k)),       # activations
                pl.BlockSpec((tk, r_pad), lambda i, k: (k, 0)),    # A (LoRA right)
            ],
            out_specs=pl.BlockSpec((tm, r_pad), lambda i, k: (i, 0)),
            scratch_shapes=[pltpu.VMEM((tm, r_pad), jnp.float32)],
        ),
        compiler_params=pltpu.CompilerParams(
            dimension_semantics=("parallel", "arbitrary"),
            vmem_limit_bytes=64 * 1024 * 1024,
        ),
        cost_estimate=pl.CostEstimate(
            flops=int(2 * Mp * Kp * r_pad),
            transcendentals=0,
            bytes_accessed=int((Mp * Kp + gm * Kp * r_pad + Mp * r_pad) * itemsize)),
    )(x2, a_pad)

    # ---------------- Pass 2: out = x @ W^T + bias + (low @ B) * s ----------- #
    kernel = functools.partial(_lora_linear_kernel, scaling=scaling)

    # Real streaming traffic: x re-streamed per N tile, W^T / B / bias per M tile.
    bytes_accessed = int((gn * Mp * Kp          # activations
                          + gm * Kp * Np        # W^T (dominant)
                          + gm * Np             # bias
                          + Mp * r_pad          # low (once per M tile)
                          + gm * r_pad * Np     # B
                          + Mp * Np)            # output
                         * itemsize)
    flops = int(2 * Mp * Kp * Np + 2 * Mp * r_pad * Np)

    out = pl.pallas_call(
        kernel,
        out_shape=jax.ShapeDtypeStruct((Mp, Np), x.dtype),
        grid_spec=pltpu.PrefetchScalarGridSpec(
            num_scalar_prefetch=0,
            grid=(gm, gn, gk),
            in_specs=[
                pl.BlockSpec((tm, tk), lambda i, j, k: (i, k)),        # activations
                pl.BlockSpec((tk, tn), lambda i, j, k: (k, j)),        # W^T (pre-transposed)
                pl.BlockSpec((1, tn), lambda i, j, k: (0, j)),         # bias
                pl.BlockSpec((tm, r_pad), lambda i, j, k: (i, 0)),     # low = x @ A
                pl.BlockSpec((r_pad, tn), lambda i, j, k: (0, j)),     # B (LoRA left)
            ],
            out_specs=pl.BlockSpec((tm, tn), lambda i, j, k: (i, j)),
            scratch_shapes=[
                pltpu.VMEM((tm, tn), jnp.float32),      # base-path f32 accumulator
            ],
        ),
        compiler_params=pltpu.CompilerParams(
            # low is a plain input now (no cross-j scratch), so both output axes
            # shard across TensorCores; only the contraction axis is sequential.
            dimension_semantics=("parallel", "parallel", "arbitrary"),
            # Demo tiles use ~1 MiB; 64 MiB leaves headroom for tn/tk/tm sweeps
            # on v5e/v6e.  On v7x (64 MiB physical) keep the working set <~48 MiB.
            vmem_limit_bytes=64 * 1024 * 1024,
        ),
        cost_estimate=pl.CostEstimate(
            flops=flops, transcendentals=0, bytes_accessed=bytes_accessed),
    )(x2, wt, b2d, low, bl_pad)

    if Mp != M or Np != N:
        out = out[:M, :N]
    return out.reshape(*lead, N)


if __name__ == "__main__":
    import math

    key = jax.random.PRNGKey(0)
    k_x, k_w, k_b, k_a, k_l = jax.random.split(key, 5)

    # Small-but-tiled shapes: batch=4, seq=64 -> M=256 rows, in=256, out=384, r=16.
    batch, seq, in_features, out_features, lora_dim = 4, 64, 256, 384, 16
    lora_scaling_param = 1.0
    lora_scaling = lora_scaling_param / lora_dim   # module does the /lora_dim itself

    dtype = jnp.float32
    x = jax.random.normal(k_x, (batch, seq, in_features), dtype=dtype)
    weight = jax.random.normal(k_w, (out_features, in_features), dtype=dtype) * 0.05
    bias = jax.random.normal(k_b, (out_features,), dtype=dtype) * 0.1

    # reset_parameters(): kaiming_uniform_(lora_right_weight, a=sqrt(5)).
    # lora_left is zero-initialized in the module; we use non-zero values here so
    # the LoRA branch actually contributes to the numerical check.
    fan_in = lora_dim
    bound = math.sqrt(2.0 / (1.0 + 5.0)) * math.sqrt(3.0 / fan_in)
    lora_right = jax.random.uniform(k_a, (in_features, lora_dim), dtype=dtype,
                                    minval=-bound, maxval=bound)
    lora_left = jax.random.normal(k_l, (lora_dim, out_features), dtype=dtype) * 0.1

    # One-time "model load" preprocessing of the frozen weights (transpose + pad).
    # Small tiles so the demo exercises a multi-tile grid: grid = (2, 3, 2).
    params = prepare_lora_params(weight, bias, lora_right, lora_left, lora_scaling,
                                 tn=128, tk=128)
    out = lora_linear(x, params, tm=128)
    out = jax.block_until_ready(out)

    # Pure-JAX reference of the forward semantics (high-precision matmuls).
    hp = jax.lax.Precision.HIGHEST
    x2 = x.reshape(-1, in_features)
    ref = (jnp.dot(x2, weight.T, precision=hp) + bias
           + jnp.dot(jnp.dot(x2, lora_right, precision=hp), lora_left, precision=hp)
           * lora_scaling)
    ref = ref.reshape(batch, seq, out_features)

    assert out.shape == ref.shape
    max_err = float(jnp.max(jnp.abs(out - ref)))
    assert jnp.allclose(out, ref, atol=1e-3, rtol=1e-3), f"mismatch vs reference: {max_err}"

    # TODO(synk): stochastic lora_dropout (lora_droppout > 0) and the fused-weight
    # inference path (fuse_lora=True: plain GEMM with W_eff) are not implemented.
    print("KERNEL_OK")
</pallas_src>

<mosaic_0001>
module attributes {stable_mosaic.version = 11 : i64} {
  func.func @_lora_down_kernel(%arg0: i32, %arg1: i32, %arg2: memref<128x128xf32, #tpu.memory_space<vmem>>, %arg3: memref<128x128xf32, #tpu.memory_space<vmem>>, %arg4: memref<128x128xf32, #tpu.memory_space<vmem>>, %arg5: memref<128x128xf32, #tpu.memory_space<vmem>>) attributes {dimension_semantics = [#tpu.dimension_semantics<parallel>, #tpu.dimension_semantics<arbitrary>], iteration_bounds = array<i64: 2, 2>, scalar_prefetch = 0 : i64, scratch_operands = 1 : i64, tpu.core_type = #tpu.core_type<tc>, window_params = [{transform_indices = @transform_0, window_bounds = array<i64: 128, 128>}, {transform_indices = @transform_1, window_bounds = array<i64: 128, 128>}, {transform_indices = @transform_2, window_bounds = array<i64: 128, 128>}]} {
    %c0_i32 = arith.constant 0 : i32
    %0 = arith.cmpi eq, %arg1, %c0_i32 : i32
    %1 = arith.extui %0 : i1 to i32
    %c0_i32_0 = arith.constant 0 : i32
    %2 = arith.cmpi ne, %1, %c0_i32_0 : i32
    scf.if %2 {
      %cst_9 = arith.constant 0.000000e+00 : f32
      %12 = vector.broadcast %cst_9 : f32 to vector<128x128xf32>
      %c0_10 = arith.constant 0 : index
      %c0_11 = arith.constant 0 : index
      %13 = vector.load %arg5[%c0_10, %c0_11] : memref<128x128xf32, #tpu.memory_space<vmem>>, vector<128x128xf32>
      tpu.vector_store %arg5[%c0_10, %c0_11], %12 {strides = array<i32>} : memref<128x128xf32, #tpu.memory_space<vmem>>, vector<128x128xf32>,
    } else {
    }
    %c0 = arith.constant 0 : index
    %c0_1 = arith.constant 0 : index
    %3 = vector.load %arg5[%c0, %c0_1] : memref<128x128xf32, #tpu.memory_space<vmem>>, vector<128x128xf32>
    %c0_2 = arith.constant 0 : index
    %c0_3 = arith.constant 0 : index
    %4 = vector.load %arg2[%c0_2, %c0_3] : memref<128x128xf32, #tpu.memory_space<vmem>>, vector<128x128xf32>
    %c0_4 = arith.constant 0 : index
    %c0_5 = arith.constant 0 : index
    %5 = vector.load %arg3[%c0_4, %c0_5] : memref<128x128xf32, #tpu.memory_space<vmem>>, vector<128x128xf32>
    %cst = arith.constant dense<0.000000e+00> : vector<128x128xf32>
    %6 = tpu.matmul %4, %5, %cst {dimension_numbers = #tpu.dot_dimension_numbers<[1], [0], [0], [1], [0, 0, 1, 1], [], []>} : vector<128x128xf32>, vector<128x128xf32>, vector<128x128xf32> -> vector<128x128xf32>
    %7 = arith.addf %3, %6 : vector<128x128xf32>
    %c0_6 = arith.constant 0 : index
    %c0_7 = arith.constant 0 : index
    %8 = vector.load %arg5[%c0_6, %c0_7] : memref<128x128xf32, #tpu.memory_space<vmem>>, vector<128x128xf32>
    tpu.vector_store %arg5[%c0_6, %c0_7], %7 {strides = array<i32>} : memref<128x128xf32, #tpu.memory_space<vmem>>, vector<128x128xf32>,
    %c1_i32 = arith.constant 1 : i32
    %9 = arith.cmpi eq, %arg1, %c1_i32 : i32
    %10 = arith.extui %9 : i1 to i32
    %c0_i32_8 = arith.constant 0 : i32
    %11 = arith.cmpi ne, %10, %c0_i32_8 : i32
    scf.if %11 {
      %c0_9 = arith.constant 0 : index
      %c0_10 = arith.constant 0 : index
      %12 = vector.load %arg5[%c0_9, %c0_10] : memref<128x128xf32, #tpu.memory_space<vmem>>, vector<128x128xf32>
      %c0_11 = arith.constant 0 : index
      %c0_12 = arith.constant 0 : index
      %13 = vector.load %arg4[%c0_11, %c0_12] : memref<128x128xf32, #tpu.memory_space<vmem>>, vector<128x128xf32>
      tpu.vector_store %arg4[%c0_11, %c0_12], %12 {strides = array<i32>} : memref<128x128xf32, #tpu.memory_space<vmem>>, vector<128x128xf32>,
    } else {
    }
    return
  }
  func.func @transform_0(%arg0: i32, %arg1: i32) -> (i32, i32) {
    %c0_i32 = arith.constant 0 : i32
    return %arg0, %arg1 : i32, i32
  }
  func.func @transform_1(%arg0: i32, %arg1: i32) -> (i32, i32) {
    %c0_i32 = arith.constant 0 : i32
    %c0_i32_0 = arith.constant 0 : i32
    return %arg1, %c0_i32 : i32, i32
  }
  func.func @transform_2(%arg0: i32, %arg1: i32) -> (i32, i32) {
    %c0_i32 = arith.constant 0 : i32
    %c0_i32_0 = arith.constant 0 : i32
    return %arg0, %c0_i32 : i32, i32
  }
}

</mosaic_0001>

<llo_original>
// kernel: tpu_custom_call.1
$region0: #{tpu_custom_call.1}
  #allocation0 [shape = 'u32[]', space=smem, size = 0x4, offset = 0x4, fixed_abs, tag = 'smem constant byte address 0x4 - core index']
  #allocation1 [shape = 'u32[144,128]{1,0:T(1,128)}', space=vmem, size = 0x12000, scoped, tag = 'internal scratch']
  #allocation2 [shape = 'f32[128,128]{1,0:T(8,128)}', space=vmem, size = 0x10000, scoped, tag = 'scratch operand']
  %s0 = inlined_call_operand.hbm [shape: f32[256,256], index: 0, kind: input, shape index: {}]
  %s1 = inlined_call_operand.hbm [shape: f32[256,128], index: 1, kind: input, shape index: {}]
  %s2 = inlined_call_operand.hbm [shape: f32[256,128], index: 2, kind: output, shape index: {}]
  %s3 = sld [smem:[#allocation0]]
  $region57: #{tpu_custom_call.1} parent=0
    _
  %s5 = ssub.s32 1, %s3
  %s6 = scalar_select 0, %s5, %s3
  $region1: #{tpu_custom_call.1} parent=0
    #allocation3 [shape = 'u8[131072]{0}', space=vmem, size = 0x20000, scoped, tag = 'input window, operand 0']
    #allocation4 [shape = 's32[2]{0}', space=sflag, size = 0x8, scoped, tag = 'scoped memory for tpu_custom_call.1']
    #allocation5 [shape = 's32[2]{0}', space=sflag, size = 0x8, scoped, tag = 'scoped memory for tpu_custom_call.1']
    #allocation6 [shape = 'u8[131072]{0}', space=vmem, size = 0x20000, scoped, tag = 'input window, operand 1']
    #allocation7 [shape = 's32[2]{0}', space=sflag, size = 0x8, scoped, tag = 'scoped memory for tpu_custom_call.1']
    #allocation8 [shape = 'u8[131072]{0}', space=vmem, size = 0x20000, scoped, tag = 'output window, operand 0']
    %7 = vsyncpa [#allocation4], 0
    %s8 = scalar_lea.sflag [#allocation4], 1
    %9 = vsyncpa %s8, 0
    %10 = vsyncpa [#allocation7], 0
    %s11 = scalar_lea.sflag [#allocation7], 1
    %12 = vsyncpa %s11, 0
    %13 = vsyncpa [#allocation5], 0
    %s14 = scalar_lea.sflag [#allocation5], 1
    %15 = vsyncpa %s14, 0
    loop: start=0, step=1, limit=6
    $region2: #{tpu_custom_call.1} parent=1 // loop_pre_header
      _
    $region3: #{tpu_custom_call.1} parent=1 // loop_header
      %s17 = sphi 0, %s21
      %p18 = scmp.ge.s32.totalorder %s17, 6
      %s24 = sphi 0, %s36
      %s25 = sphi 0, %s32
      %s26 = sphi 0, %s24
      %s27 = sphi 0, %s25
      %s28 = sphi 0, %s26
      %s29 = sphi 0, %s27
      %s41 = sphi 0, %s43
      %s44 = sphi 0, %s41
      %s45 = sphi 0, %s44
      %s61 = sphi 0, %s45
      %s67 = sphi 0, %s69
      %s70 = sphi 0, %s67
      %s71 = sphi 0, %s70
      %s87 = sphi 0, %s71
      %s93 = sphi 0, %s95
      %s96 = sphi 0, %s93
      %s97 = sphi 0, %s96
      %s113 = sphi 0, %s97
    $region4: #{tpu_custom_call.1} parent=1 // loop_header_branch
      %20 = sbr.rel (%p18) target = $region8
    $region5: #{tpu_custom_call.1} parent=1 // loop_body
      %s22 = ssub.s32 %s17, 1
      %s23 = ssub.s32 %s17, 2
      %s30 = sadd.s32 1, %s25
      %p31 = scmp.ge.s32.totalorder %s30, 2
      %s32 = scalar_select %p31, 0, %s30
      %s33 = sadd.s32 1, %s24
      %s34 = scalar_select %p31, %s33, %s24
      %p35 = scmp.ge.s32.totalorder %s34, 2
      %s36 = scalar_select %p35, 0, %s34
      %s37 = ssub.s32 %s24, %s36
      %s38 = ssub.s32 %s25, %s32
      %s39 = sor.u32 %s37, %s38
      %p40 = scmp.eq.s32.totalorder %s39, 0
      %s42 = sadd.s32 %s41, 1
      %s43 = scalar_select %p40, %s41, %s42
      %p46 = pneg %p40
      %p47 = scmp.eq.s32.totalorder %s17, 3
      %p48 = por %p46, %p47
      %p49 = scmp.ne.s32.totalorder %s41, %s44
      %p50 = scmp.eq.s32.totalorder %s17, 0
      %p51 = por %p49, %p50
      %p52 = scmp.ne.s32.totalorder %s41, %s44
      %p53 = scmp.eq.s32.totalorder %s22, 3
      %p54 = por %p52, %p53
      %p55 = scmp.ne.s32.totalorder %s44, %s45
      %p56 = scmp.eq.s32.totalorder %s22, 0
      %p57 = por %p55, %p56
      %p58 = scmp.ne.s32.totalorder %s44, %s45
      %p59 = scmp.eq.s32.totalorder %s23, 3
      %p60 = por %p58, %p59
      %p62 = scmp.ne.s32.totalorder %s45, %s61
      %p63 = scmp.eq.s32.totalorder %s23, 0
      %p64 = por %p62, %p63
      %s65 = ssub.s32 %s25, %s32
      %p66 = scmp.eq.s32.totalorder %s65, 0
      %s68 = sadd.s32 %s67, 1
      %s69 = scalar_select %p66, %s67, %s68
      %p72 = pneg %p66
      %p73 = scmp.eq.s32.totalorder %s17, 3
      %p74 = por %p72, %p73
      %p75 = scmp.ne.s32.totalorder %s67, %s70
      %p76 = scmp.eq.s32.totalorder %s17, 0
      %p77 = por %p75, %p76
      %p78 = scmp.ne.s32.totalorder %s67, %s70
      %p79 = scmp.eq.s32.totalorder %s22, 3
      %p80 = por %p78, %p79
      %p81 = scmp.ne.s32.totalorder %s70, %s71
      %p82 = scmp.eq.s32.totalorder %s22, 0
      %p83 = por %p81, %p82
      %p84 = scmp.ne.s32.totalorder %s70, %s71
      %p85 = scmp.eq.s32.totalorder %s23, 3
      %p86 = por %p84, %p85
      %p88 = scmp.ne.s32.totalorder %s71, %s87
      %p89 = scmp.eq.s32.totalorder %s23, 0
      %p90 = por %p88, %p89
      %s91 = ssub.s32 %s24, %s36
      %p92 = scmp.eq.s32.totalorder %s91, 0
      %s94 = sadd.s32 %s93, 1
      %s95 = scalar_select %p92, %s93, %s94
      %p98 = pneg %p92
      %p99 = scmp.eq.s32.totalorder %s17, 3
      %p100 = por %p98, %p99
      %p101 = scmp.ne.s32.totalorder %s93, %s96
      %p102 = scmp.eq.s32.totalorder %s17, 0
      %p103 = por %p101, %p102
      %p104 = scmp.ne.s32.totalorder %s93, %s96
      %p105 = scmp.eq.s32.totalorder %s22, 3
      %p106 = por %p104, %p105
      %p107 = scmp.ne.s32.totalorder %s96, %s97
      %p108 = scmp.eq.s32.totalorder %s22, 0
      %p109 = por %p107, %p108
      %p110 = scmp.ne.s32.totalorder %s96, %s97
      %p111 = scmp.eq.s32.totalorder %s23, 3
      %p112 = por %p110, %p111
      %p114 = scmp.ne.s32.totalorder %s97, %s113
      %p115 = scmp.eq.s32.totalorder %s23, 0
      %p116 = por %p114, %p115
      %p117 = scmp.le.s32.totalorder 1, %s17
      %p118 = scmp.lt.s32.totalorder %s17, 5
      %p119 = pnand %p117, %p118
      %p120 = pneg %p119
      // Predicated region
      $region9: #{tpu_custom_call.1} parent=5 // pred_check
        _
      $region10: #{tpu_custom_call.1} parent=5 // pred_check_branch
        %122 = sbr.rel (%p119) target = $region12
      $region11: #{tpu_custom_call.1} parent=5 // pred_region
        %s123 = ssub.s32 %s17, 1
      $region12: #{tpu_custom_call.1} parent=5 // pred_fallthru
        _
      %p124 = scmp.lt.s32.totalorder %s17, 4
      // Predicated region
      $region13: #{tpu_custom_call.1} parent=5 // pred_check
        %p125 = pneg %p124
      $region14: #{tpu_custom_call.1} parent=5 // pred_check_branch
        %127 = sbr.rel (%p125) target = $region16
      $region15: #{tpu_custom_call.1} parent=5 // pred_region
        // Predicated region
        $region17: #{tpu_custom_call.1} parent=15 // pred_check
          %p128 = pneg %p51
        $region18: #{tpu_custom_call.1} parent=15 // pred_check_branch
          %130 = sbr.rel (%p128) target = $region20
        $region19: #{tpu_custom_call.1} parent=15 // pred_region
          %s131 = sand.u32 %s41, 1
          %s132 = scalar_lea.sflag [#allocation4], %s131
          %s133 = sand.u32 %s41, 1
          %s134 = smul.addr %s133, 128
          %s135 = scalar_lea.vmem [#allocation3], %s134
          %s136 = smul.u32 16, %s24
          %s138 = ssub.s32 2048, 2048
          %139 = vsyncadd %s132, %s138
          %s140 = smul.addr %s136, 2
          %s141 = sadd.s32 %s25, %s140
          %s142 = smul.addr %s141, 128
          %s143 = scalar_lea.hbm %s0, %s142
          %s144 = sshll.u32 %s135, 4
          %s145 = int_to_ptr.vmem [resolvable:$true] %s144
          %150 = dma.hbm_to_vmem [thread:$0]  %s143, 2048, %s145, %s132, 256, 128, 8
        $region20: #{tpu_custom_call.1} parent=15 // pred_fallthru
          _
        // Predicated region
        $region21: #{tpu_custom_call.1} parent=15 // pred_check
          %p151 = pneg %p77
        $region22: #{tpu_custom_call.1} parent=15 // pred_check_branch
          %153 = sbr.rel (%p151) target = $region24
        $region23: #{tpu_custom_call.1} parent=15 // pred_region
          %s154 = sand.u32 %s67, 1
          %s155 = scalar_lea.sflag [#allocation7], %s154
          %s156 = sand.u32 %s67, 1
          %s157 = smul.addr %s156, 128
          %s158 = scalar_lea.vmem [#allocation6], %s157
          %s159 = smul.u32 16, %s25
          %s161 = ssub.s32 2048, 2048
          %162 = vsyncadd %s155, %s161
          %s163 = smul.addr %s159, 128
          %s164 = scalar_lea.hbm %s1, %s163
          %s165 = sshll.u32 %s158, 4
          %s166 = int_to_ptr.vmem [resolvable:$true] %s165
          %171 = dma.hbm_to_vmem [thread:$0]  %s164, 2048, %s166, %s155, 128, 128, 8
        $region24: #{tpu_custom_call.1} parent=15 // pred_fallthru
          _
      $region16: #{tpu_custom_call.1} parent=5 // pred_fallthru
        _
      %p172 = scmp.le.s32.totalorder 1, %s17
      %p173 = scmp.lt.s32.totalorder %s17, 5
      %p174 = pnand %p172, %p173
      %p175 = pneg %p174
      // Predicated region
      $region25: #{tpu_custom_call.1} parent=5 // pred_check
        _
      $region26: #{tpu_custom_call.1} parent=5 // pred_check_branch
        %177 = sbr.rel (%p174) target = $region28
      $region27: #{tpu_custom_call.1} parent=5 // pred_region
        %s178 = ssub.s32 %s17, 1
        %s179 = sand.u32 %s44, 1
        %s180 = scalar_lea.sflag [#allocation4], %s179
        %s181 = sand.u32 %s44, 1
        %s182 = smul.addr %s181, 128
        %s183 = scalar_lea.vmem [#allocation3], %s182
        // Predicated region
        $region29: #{tpu_custom_call.1} parent=27 // pred_check
          %p184 = pneg %p57
        $region30: #{tpu_custom_call.1} parent=27 // pred_check_branch
          %186 = sbr.rel (%p184) target = $region32
        $region31: #{tpu_custom_call.1} parent=27 // pred_region
          %187 = dma.done %s180, 2048
        $region32: #{tpu_custom_call.1} parent=27 // pred_fallthru
          _
        %s188 = sand.u32 %s70, 1
        %s189 = scalar_lea.sflag [#allocation7], %s188
        %s190 = sand.u32 %s70, 1
        %s191 = smul.addr %s190, 128
        %s192 = scalar_lea.vmem [#allocation6], %s191
        // Predicated region
        $region33: #{tpu_custom_call.1} parent=27 // pred_check
          %p193 = pneg %p83
        $region34: #{tpu_custom_call.1} parent=27 // pred_check_branch
          %195 = sbr.rel (%p193) target = $region36
        $region35: #{tpu_custom_call.1} parent=27 // pred_region
          %196 = dma.done %s189, 2048
        $region36: #{tpu_custom_call.1} parent=27 // pred_fallthru
          _
        %s197 = sand.u32 %s44, 1
        %s198 = scalar_lea.sflag [#allocation4], %s197
        %s199 = sand.u32 %s44, 1
        %s200 = smul.addr %s199, 128
        %s201 = scalar_lea.vmem [#allocation3], %s200
        %p202 = pneg %p57
        %p203 = pneg %p54
        %s204 = sand.u32 %s70, 1
        %s205 = scalar_lea.sflag [#allocation7], %s204
        %s206 = sand.u32 %s70, 1
        %s207 = smul.addr %s206, 128
        %s208 = scalar_lea.vmem [#allocation6], %s207
        %p209 = pneg %p83
        %p210 = pneg %p80
        %p211 = pneg %p109
        %p212 = pneg %p106
        %s213 = sand.u32 %s96, 1
        %s214 = scalar_lea.sflag [#allocation5], %s213
        %s215 = sand.u32 %s96, 1
        %s216 = smul.addr %s215, 128
        %s217 = scalar_lea.vmem [#allocation8], %s216
        %s218 = smul.u32 16, %s26
        %s219 = smul.u32 16, %s27
        %s220 = smul.u32 16, %s26
        %p221 = scmp.eq.s32.totalorder %s27, 0
        // Predicated region
        $region37: #{tpu_custom_call.1} parent=27 // pred_check
          %p222 = pneg %p221
        $region38: #{tpu_custom_call.1} parent=27 // pred_check_branch
          %224 = sbr.rel (%p222) target = $region40
        $region39: #{tpu_custom_call.1} parent=27 // pred_region
          %225 = vst [vmem:[#allocation2] sm:$0xff] 0.0
          %226 = vst [vmem:[#allocation2 + $0x8] sm:$0xff] 0.0
          %227 = vst [vmem:[#allocation2 + $0x10] sm:$0xff] 0.0
          %228 = vst [vmem:[#allocation2 + $0x18] sm:$0xff] 0.0
          %229 = vst [vmem:[#allocation2 + $0x20] sm:$0xff] 0.0
          %230 = vst [vmem:[#allocation2 + $0x28] sm:$0xff] 0.0
          %231 = vst [vmem:[#allocation2 + $0x30] sm:$0xff] 0.0
          %232 = vst [vmem:[#allocation2 + $0x38] sm:$0xff] 0.0
          %233 = vst [vmem:[#allocation2 + $0x40] sm:$0xff] 0.0
          %234 = vst [vmem:[#allocation2 + $0x48] sm:$0xff] 0.0
          %235 = vst [vmem:[#allocation2 + $0x50] sm:$0xff] 0.0
          %236 = vst [vmem:[#allocation2 + $0x58] sm:$0xff] 0.0
          %237 = vst [vmem:[#allocation2 + $0x60] sm:$0xff] 0.0
          %238 = vst [vmem:[#allocation2 + $0x68] sm:$0xff] 0.0
          %239 = vst [vmem:[#allocation2 + $0x70] sm:$0xff] 0.0
          %240 = vst [vmem:[#allocation2 + $0x78] sm:$0xff] 0.0
        $region40: #{tpu_custom_call.1} parent=27 // pred_fallthru
          _
        %v241 = vld [vmem:[#allocation2] sm:$0xff]
        %v242 = vld [vmem:[#allocation2 + $0x8] sm:$0xff]
        %v243 = vld [vmem:[#allocation2 + $0x10] sm:$0xff]
        %v244 = vld [vmem:[#allocation2 + $0x18] sm:$0xff]
        %v245 = vld [vmem:[#allocation2 + $0x20] sm:$0xff]
        %v246 = vld [vmem:[#allocation2 + $0x28] sm:$0xff]
        %v247 = vld [vmem:[#allocation2 + $0x30] sm:$0xff]
        %v248 = vld [vmem:[#allocation2 + $0x38] sm:$0xff]
        %v249 = vld [vmem:[#allocation2 + $0x40] sm:$0xff]
        %v250 = vld [vmem:[#allocation2 + $0x48] sm:$0xff]
        %v251 = vld [vmem:[#allocation2 + $0x50] sm:$0xff]
        %v252 = vld [vmem:[#allocation2 + $0x58] sm:$0xff]
        %v253 = vld [vmem:[#allocation2 + $0x60] sm:$0xff]
        %v254 = vld [vmem:[#allocation2 + $0x68] sm:$0xff]
        %v255 = vld [vmem:[#allocation2 + $0x70] sm:$0xff]
        %v256 = vld [vmem:[#allocation2 + $0x78] sm:$0xff]
        %v257 = vld [vmem:[%s183] sm:$0xff]
        %v258 = vld [vmem:[%s183 + $0x8] sm:$0xff]
        %v259 = vld [vmem:[%s183 + $0x10] sm:$0xff]
        %v260 = vld [vmem:[%s183 + $0x18] sm:$0xff]
        %v261 = vld [vmem:[%s183 + $0x20] sm:$0xff]
        %v262 = vld [vmem:[%s183 + $0x28] sm:$0xff]
        %v263 = vld [vmem:[%s183 + $0x30] sm:$0xff]
        %v264 = vld [vmem:[%s183 + $0x38] sm:$0xff]
        %v265 = vld [vmem:[%s183 + $0x40] sm:$0xff]
        %v266 = vld [vmem:[%s183 + $0x48] sm:$0xff]
        %v267 = vld [vmem:[%s183 + $0x50] sm:$0xff]
        %v268 = vld [vmem:[%s183 + $0x58] sm:$0xff]
        %v269 = vld [vmem:[%s183 + $0x60] sm:$0xff]
        %v270 = vld [vmem:[%s183 + $0x68] sm:$0xff]
        %v271 = vld [vmem:[%s183 + $0x70] sm:$0xff]
        %v272 = vld [vmem:[%s183 + $0x78] sm:$0xff]
        %v273 = vld [vmem:[%s192] sm:$0xff]
        %v274 = vld [vmem:[%s192 + $0x8] sm:$0xff]
        %v275 = vld [vmem:[%s192 + $0x10] sm:$0xff]
        %v276 = vld [vmem:[%s192 + $0x18] sm:$0xff]
        %v277 = vld [vmem:[%s192 + $0x20] sm:$0xff]
        %v278 = vld [vmem:[%s192 + $0x28] sm:$0xff]
        %v279 = vld [vmem:[%s192 + $0x30] sm:$0xff]
        %v280 = vld [vmem:[%s192 + $0x38] sm:$0xff]
        %v281 = vld [vmem:[%s192 + $0x40] sm:$0xff]
        %v282 = vld [vmem:[%s192 + $0x48] sm:$0xff]
        %v283 = vld [vmem:[%s192 + $0x50] sm:$0xff]
        %v284 = vld [vmem:[%s192 + $0x58] sm:$0xff]
        %v285 = vld [vmem:[%s192 + $0x60] sm:$0xff]
        %v286 = vld [vmem:[%s192 + $0x68] sm:$0xff]
        %v287 = vld [vmem:[%s192 + $0x70] sm:$0xff]
        %v288 = vld [vmem:[%s192 + $0x78] sm:$0xff]
        %289 = vmatprep.subr.mxu0 0.0
        %290 = vmatpush1.msra.mxu0 %v273
        %291 = vmatprep.subr.mxu0 0.0
        %292 = vmatpush1.msra.mxu0 %v274
        %293 = vmatprep.subr.mxu0 0.0
        %294 = vmatpush1.msra.mxu0 %v275
        %295 = vmatprep.subr.mxu0 0.0
        %296 = vmatpush1.msra.mxu0 %v276
        %297 = vmatprep.subr.mxu0 0.0
        %298 = vmatpush1.msra.mxu0 %v277
        %299 = vmatprep.subr.mxu0 0.0
        %300 = vmatpush1.msra.mxu0 %v278
        %301 = vmatprep.subr.mxu0 0.0
        %302 = vmatpush1.msra.mxu0 %v279
        %303 = vmatprep.subr.mxu0 0.0
        %304 = vmatpush1.msra.mxu0 %v280
        %305 = vmatprep.subr.mxu0 0.0
        %306 = vmatpush1.msra.mxu0 %v281
        %307 = vmatprep.subr.mxu0 0.0
        %308 = vmatpush1.msra.mxu0 %v282
        %309 = vmatprep.subr.mxu0 0.0
        %310 = vmatpush1.msra.mxu0 %v283
        %311 = vmatprep.subr.mxu0 0.0
        %312 = vmatpush1.msra.mxu0 %v284
        %313 = vmatprep.subr.mxu0 0.0
        %314 = vmatpush1.msra.mxu0 %v285
        %315 = vmatprep.subr.mxu0 0.0
        %316 = vmatpush1.msra.mxu0 %v286
        %317 = vmatprep.subr.mxu0 0.0
        %318 = vmatpush1.msra.mxu0 %v287
        %319 = vmatprep.subr.mxu0 0.0
        %320 = vmatpush1.msra.mxu0 %v288
        %321 = vmatprep.subr.mxu0 0.0
        %322 = vmatpush1.msra.mxu0 0.0
        %323 = vmatprep.subr.mxu0 0.0
        %324 = vmatpush1.msra.mxu0 0.0
        %325 = vmatprep.subr.mxu0 0.0
        %326 = vmatpush1.msra.mxu0 0.0
        %327 = vmatprep.subr.mxu0 0.0
        %328 = vmatpush1.msra.mxu0 0.0
        %329 = vmatprep.subr.mxu0 0.0
        %330 = vmatpush1.msra.mxu0 0.0
        %331 = vmatprep.subr.mxu0 0.0
        %332 = vmatpush1.msra.mxu0 0.0
        %333 = vmatprep.subr.mxu0 0.0
        %334 = vmatpush1.msra.mxu0 0.0
        %335 = vmatprep.subr.mxu0 0.0
        %336 = vmatpush1.msra.mxu0 0.0
        %337 = vmatprep.subr.mxu0 0.0
        %338 = vmatpush1.msra.mxu0 0.0
        %339 = vmatprep.subr.mxu0 0.0
        %340 = vmatpush1.msra.mxu0 0.0
        %341 = vmatprep.subr.mxu0 0.0
        %342 = vmatpush1.msra.mxu0 0.0
        %343 = vmatprep.subr.mxu0 0.0
        %344 = vmatpush1.msra.mxu0 0.0
        %345 = vmatprep.subr.mxu0 0.0
        %346 = vmatpush1.msra.mxu0 0.0
        %347 = vmatprep.subr.mxu0 0.0
        %348 = vmatpush1.msra.mxu0 0.0
        %349 = vmatprep.subr.mxu0 0.0
        %350 = vmatpush1.msra.mxu0 0.0
        %351 = vmatprep.subr.mxu0 0.0
        %352 = vmatpush1.msra.mxu0 0.0
        %353 = vmatprep.mubr.f32.mxu0 0.0
        %354 = vmatmul.mubr.f32.gmra.mrb[0].mxu0 %v257
        %v355 = vpop.f32.mrb[0].mxu0
        %v356 = vadd.f32 0.0, %v355
        %v357 = vpop.f32.mrb[0].mxu0
        %358 = vmatprep.mubr.f32.mxu0 0.0
        %359 = vmatmul.mubr.f32.gmra.mrb[0].mxu0 %v258
        %v360 = vpop.f32.mrb[0].mxu0
        %v361 = vadd.f32 0.0, %v360
        %v362 = vpop.f32.mrb[0].mxu0
        %363 = vmatprep.mubr.f32.mxu0 0.0
        %364 = vmatmul.mubr.f32.gmra.mrb[0].mxu0 %v259
        %v365 = vpop.f32.mrb[0].mxu0
        %v366 = vadd.f32 0.0, %v365
        %v367 = vpop.f32.mrb[0].mxu0
        %368 = vmatprep.mubr.f32.mxu0 0.0
        %369 = vmatmul.mubr.f32.gmra.mrb[0].mxu0 %v260
        %v370 = vpop.f32.mrb[0].mxu0
        %v371 = vadd.f32 0.0, %v370
        %v372 = vpop.f32.mrb[0].mxu0
        %373 = vmatprep.mubr.f32.mxu0 0.0
        %374 = vmatmul.mubr.f32.gmra.mrb[0].mxu0 %v261
        %v375 = vpop.f32.mrb[0].mxu0
        %v376 = vadd.f32 0.0, %v375
        %v377 = vpop.f32.mrb[0].mxu0
        %378 = vmatprep.mubr.f32.mxu0 0.0
        %379 = vmatmul.mubr.f32.gmra.mrb[0].mxu0 %v262
        %v380 = vpop.f32.mrb[0].mxu0
        %v381 = vadd.f32 0.0, %v380
        %v382 = vpop.f32.mrb[0].mxu0
        %383 = vmatprep.mubr.f32.mxu0 0.0
        %384 = vmatmul.mubr.f32.gmra.mrb[0].mxu0 %v263
        %v385 = vpop.f32.mrb[0].mxu0
        %v386 = vadd.f32 0.0, %v385
        %v387 = vpop.f32.mrb[0].mxu0
        %388 = vmatprep.mubr.f32.mxu0 0.0
        %389 = vmatmul.mubr.f32.gmra.mrb[0].mxu0 %v264
        %v390 = vpop.f32.mrb[0].mxu0
        %v391 = vadd.f32 0.0, %v390
        %v392 = vpop.f32.mrb[0].mxu0
        %393 = vmatprep.mubr.f32.mxu0 0.0
        %394 = vmatmul.mubr.f32.gmra.mrb[0].mxu0 %v265
        %v395 = vpop.f32.mrb[0].mxu0
        %v396 = vadd.f32 0.0, %v395
        %v397 = vpop.f32.mrb[0].mxu0
        %398 = vmatprep.mubr.f32.mxu0 0.0
        %399 = vmatmul.mubr.f32.gmra.mrb[0].mxu0 %v266
        %v400 = vpop.f32.mrb[0].mxu0
        %v401 = vadd.f32 0.0, %v400
        %v402 = vpop.f32.mrb[0].mxu0
        %403 = vmatprep.mubr.f32.mxu0 0.0
        %404 = vmatmul.mubr.f32.gmra.mrb[0].mxu0 %v267
        %v405 = vpop.f32.mrb[0].mxu0
        %v406 = vadd.f32 0.0, %v405
        %v407 = vpop.f32.mrb[0].mxu0
        %408 = vmatprep.mubr.f32.mxu0 0.0
        %409 = vmatmul.mubr.f32.gmra.mrb[0].mxu0 %v268
        %v410 = vpop.f32.mrb[0].mxu0
        %v411 = vadd.f32 0.0, %v410
        %v412 = vpop.f32.mrb[0].mxu0
        %413 = vmatprep.mubr.f32.mxu0 0.0
        %414 = vmatmul.mubr.f32.gmra.mrb[0].mxu0 %v269
        %v415 = vpop.f32.mrb[0].mxu0
        %v416 = vadd.f32 0.0, %v415
        %v417 = vpop.f32.mrb[0].mxu0
        %418 = vmatprep.mubr.f32.mxu0 0.0
        %419 = vmatmul.mubr.f32.gmra.mrb[0].mxu0 %v270
        %v420 = vpop.f32.mrb[0].mxu0
        %v421 = vadd.f32 0.0, %v420
        %v422 = vpop.f32.mrb[0].mxu0
        %423 = vmatprep.mubr.f32.mxu0 0.0
        %424 = vmatmul.mubr.f32.gmra.mrb[0].mxu0 %v271
        %v425 = vpop.f32.mrb[0].mxu0
        %v426 = vadd.f32 0.0, %v425
        %v427 = vpop.f32.mrb[0].mxu0
        %428 = vmatprep.mubr.f32.mxu0 0.0
        %429 = vmatmul.mubr.f32.gmra.mrb[0].mxu0 %v272
        %v430 = vpop.f32.mrb[0].mxu0
        %v431 = vadd.f32 0.0, %v430
        %v432 = vpop.f32.mrb[0].mxu0
        %433 = vdwg.mxu0
        %v434 = vadd.f32 %v241, %v356
        %v435 = vadd.f32 %v242, %v361
        %v436 = vadd.f32 %v243, %v366
        %v437 = vadd.f32 %v244, %v371
        %v438 = vadd.f32 %v245, %v376
        %v439 = vadd.f32 %v246, %v381
        %v440 = vadd.f32 %v247, %v386
        %v441 = vadd.f32 %v248, %v391
        %v442 = vadd.f32 %v249, %v396
        %v443 = vadd.f32 %v250, %v401
        %v444 = vadd.f32 %v251, %v406
        %v445 = vadd.f32 %v252, %v411
        %v446 = vadd.f32 %v253, %v416
        %v447 = vadd.f32 %v254, %v421
        %v448 = vadd.f32 %v255, %v426
        %v449 = vadd.f32 %v256, %v431
        %450 = vst [vmem:[#allocation2] sm:$0xff] %v434
        %451 = vst [vmem:[#allocation2 + $0x8] sm:$0xff] %v435
        %452 = vst [vmem:[#allocation2 + $0x10] sm:$0xff] %v436
        %453 = vst [vmem:[#allocation2 + $0x18] sm:$0xff] %v437
        %454 = vst [vmem:[#allocation2 + $0x20] sm:$0xff] %v438
        %455 = vst [vmem:[#allocation2 + $0x28] sm:$0xff] %v439
        %456 = vst [vmem:[#allocation2 + $0x30] sm:$0xff] %v440
        %457 = vst [vmem:[#allocation2 + $0x38] sm:$0xff] %v441
        %458 = vst [vmem:[#allocation2 + $0x40] sm:$0xff] %v442
        %459 = vst [vmem:[#allocation2 + $0x48] sm:$0xff] %v443
        %460 = vst [vmem:[#allocation2 + $0x50] sm:$0xff] %v444
        %461 = vst [vmem:[#allocation2 + $0x58] sm:$0xff] %v445
        %462 = vst [vmem:[#allocation2 + $0x60] sm:$0xff] %v446
        %463 = vst [vmem:[#allocation2 + $0x68] sm:$0xff] %v447
        %464 = vst [vmem:[#allocation2 + $0x70] sm:$0xff] %v448
        %465 = vst [vmem:[#allocation2 + $0x78] sm:$0xff] %v449
        %p466 = scmp.eq.s32.totalorder %s27, 1
        // Predicated region
        $region41: #{tpu_custom_call.1} parent=27 // pred_check
          %p467 = pneg %p466
        $region42: #{tpu_custom_call.1} parent=27 // pred_check_branch
          %469 = sbr.rel (%p467) target = $region44
        $region43: #{tpu_custom_call.1} parent=27 // pred_region
          %v470 = vld [vmem:[#allocation2] sm:$0xff]
          %v471 = vld [vmem:[#allocation2 + $0x8] sm:$0xff]
          %v472 = vld [vmem:[#allocation2 + $0x10] sm:$0xff]
          %v473 = vld [vmem:[#allocation2 + $0x18] sm:$0xff]
          %v474 = vld [vmem:[#allocation2 + $0x20] sm:$0xff]
          %v475 = vld [vmem:[#allocation2 + $0x28] sm:$0xff]
          %v476 = vld [vmem:[#allocation2 + $0x30] sm:$0xff]
          %v477 = vld [vmem:[#allocation2 + $0x38] sm:$0xff]
          %v478 = vld [vmem:[#allocation2 + $0x40] sm:$0xff]
          %v479 = vld [vmem:[#allocation2 + $0x48] sm:$0xff]
          %v480 = vld [vmem:[#allocation2 + $0x50] sm:$0xff]
          %v481 = vld [vmem:[#allocation2 + $0x58] sm:$0xff]
          %v482 = vld [vmem:[#allocation2 + $0x60] sm:$0xff]
          %v483 = vld [vmem:[#allocation2 + $0x68] sm:$0xff]
          %v484 = vld [vmem:[#allocation2 + $0x70] sm:$0xff]
          %v485 = vld [vmem:[#allocation2 + $0x78] sm:$0xff]
          %486 = vst [vmem:[%s217] sm:$0xff] %v470
          %487 = vst [vmem:[%s217 + $0x8] sm:$0xff] %v471
          %488 = vst [vmem:[%s217 + $0x10] sm:$0xff] %v472
          %489 = vst [vmem:[%s217 + $0x18] sm:$0xff] %v473
          %490 = vst [vmem:[%s217 + $0x20] sm:$0xff] %v474
          %491 = vst [vmem:[%s217 + $0x28] sm:$0xff] %v475
          %492 = vst [vmem:[%s217 + $0x30] sm:$0xff] %v476
          %493 = vst [vmem:[%s217 + $0x38] sm:$0xff] %v477
          %494 = vst [vmem:[%s217 + $0x40] sm:$0xff] %v478
          %495 = vst [vmem:[%s217 + $0x48] sm:$0xff] %v479
          %496 = vst [vmem:[%s217 + $0x50] sm:$0xff] %v480
          %497 = vst [vmem:[%s217 + $0x58] sm:$0xff] %v481
          %498 = vst [vmem:[%s217 + $0x60] sm:$0xff] %v482
          %499 = vst [vmem:[%s217 + $0x68] sm:$0xff] %v483
          %500 = vst [vmem:[%s217 + $0x70] sm:$0xff] %v484
          %501 = vst [vmem:[%s217 + $0x78] sm:$0xff] %v485
        $region44: #{tpu_custom_call.1} parent=27 // pred_fallthru
          _
        %s502 = sand.u32 %s96, 1
        %s503 = scalar_lea.sflag [#allocation5], %s502
        %s504 = sand.u32 %s96, 1
        %s505 = smul.addr %s504, 128
        %s506 = scalar_lea.vmem [#allocation8], %s505
        // Predicated region
        $region45: #{tpu_custom_call.1} parent=27 // pred_check
          %p507 = pneg %p106
        $region46: #{tpu_custom_call.1} parent=27 // pred_check_branch
          %509 = sbr.rel (%p507) target = $region48
        $region47: #{tpu_custom_call.1} parent=27 // pred_region
          %s510 = smul.u32 16, %s26
          %s512 = ssub.s32 2048, 2048
          %513 = vsyncadd %s503, %s512
          %s514 = smul.addr %s510, 128
          %s515 = scalar_lea.hbm %s2, %s514
          %s516 = sshll.u32 %s506, 4
          %s517 = int_to_ptr.vmem [resolvable:$true] %s516
          %522 = dma.vmem_to_hbm [thread:$0]  %s517, 2048, %s515, %s503, 128, 128, 8
        $region48: #{tpu_custom_call.1} parent=27 // pred_fallthru
          _
      $region28: #{tpu_custom_call.1} parent=5 // pred_fallthru
        _
      %p523 = scmp.le.s32.totalorder 2, %s17
      // Predicated region
      $region49: #{tpu_custom_call.1} parent=5 // pred_check
        %p524 = pneg %p523
      $region50: #{tpu_custom_call.1} parent=5 // pred_check_branch
        %526 = sbr.rel (%p524) target = $region52
      $region51: #{tpu_custom_call.1} parent=5 // pred_region
        %s527 = ssub.s32 %s17, 2
        // Predicated region
        $region53: #{tpu_custom_call.1} parent=51 // pred_check
          %p528 = pneg %p112
        $region54: #{tpu_custom_call.1} parent=51 // pred_check_branch
          %530 = sbr.rel (%p528) target = $region56
        $region55: #{tpu_custom_call.1} parent=51 // pred_region
          %s531 = sand.u32 %s97, 1
          %s532 = scalar_lea.sflag [#allocation5], %s531
          %s533 = sand.u32 %s97, 1
          %s534 = smul.addr %s533, 128
          %s535 = scalar_lea.vmem [#allocation8], %s534
          %536 = dma.done %s532, 2048
        $region56: #{tpu_custom_call.1} parent=51 // pred_fallthru
          _
      $region52: #{tpu_custom_call.1} parent=5 // pred_fallthru
        _
    $region6: #{tpu_custom_call.1} parent=1 // loop_footer
      %s21 = sadd.s32 1, %s17
    $region7: #{tpu_custom_call.1} parent=1 // loop_footer_branch
      %16 = sbr.rel target = $region3
    $region8: #{tpu_custom_call.1} parent=1 // loop_exit
      _
    %537 = vsyncpa [#allocation4], 1
    %s538 = scalar_lea.sflag [#allocation4], 1
    %539 = vsyncpa %s538, 1
    %540 = vsyncpa [#allocation7], 1
    %s541 = scalar_lea.sflag [#allocation7], 1
    %542 = vsyncpa %s541, 1
    %543 = vsyncpa [#allocation5], 1
    %s544 = scalar_lea.sflag [#allocation5], 1
    %545 = vsyncpa %s544, 1

</llo_original>
